<compile_context>
chip_gen: v7x
topology: tpu7x:2x2x1
jax: 0.10.0
libtpu: 0.0.40
codegen_flags: <defaults>
</compile_context>

<pallas_src>
import numpy as np
import jax
import jax.numpy as jnp
from jax import lax
from jax.experimental import pallas as pl
from jax.experimental.pallas import tpu as pltpu


def _make_maml_kernel(in_dim, out_dim, inner_bsz, outer_bsz,
                      inner_steps, outer_steps, lr):
    """Build the fused per-task MAML kernel (inner adapt + outer eval)."""
    gscale = 2.0 / float(inner_bsz * out_dim)   # d(mean-MSE)/d(pred) scale
    lr = float(lr)

    def kernel(xi_ref, yi_ref, xo_ref, yo_ref, w_ref, b_ref,
               loss_ref, pred_ref):
        # Task-local copies of the meta parameters (registers/VMEM values).
        w = w_ref[...]          # (in_dim, out_dim)
        b = b_ref[...]          # (1, out_dim)

        # ---- inner adaptation loop (differentiable SGD) ----
        inner_loss = jnp.float32(0.0)
        for s in range(inner_steps):              # tiny, static -> unrolled
            xb = xi_ref[pl.ds(s * inner_bsz, inner_bsz), :]   # (ib, in_dim)
            yb = yi_ref[pl.ds(s * inner_bsz, inner_bsz), :]   # (ib, out_dim)
            pred = jnp.dot(xb, w, preferred_element_type=jnp.float32) + b
            err = pred - yb
            inner_loss = jnp.mean(err * err)      # loss at pre-update params
            grad_w = jnp.einsum('bi,bo->io', xb, err,
                                preferred_element_type=jnp.float32) * gscale
            grad_b = jnp.sum(err, axis=0, keepdims=True) * gscale
            w = w - lr * grad_w
            b = b - lr * grad_b

        # ---- outer evaluation with adapted params ----
        # maml_task: loss starts from the last inner-step loss, accumulates the
        # outer batch losses, then divides by the number of outer batches.
        task_loss = inner_loss
        for s in range(outer_steps):
            xb = xo_ref[pl.ds(s * outer_bsz, outer_bsz), :]
            yb = yo_ref[pl.ds(s * outer_bsz, outer_bsz), :]
            pred = jnp.dot(xb, w, preferred_element_type=jnp.float32) + b
            pred_ref[pl.ds(s * outer_bsz, outer_bsz), :] = pred.astype(
                pred_ref.dtype)
            err = pred - yb
            task_loss = task_loss + jnp.mean(err * err)

        task_loss = task_loss / float(outer_steps)
        # Lane-dense scalar write (unmasked store into a (1,128) slab).
        loss_ref[...] = task_loss * jnp.ones(loss_ref.shape, jnp.float32)

    return kernel


def maml_forward(xs, ys, W, b, *, lr, inner_bsz, outer_bsz,
                 inner_steps, outer_steps):
    """JAX/Pallas equivalent of MAML.forward with tensor=True tasks.

    xs: (num_tasks, tsz, in_dim), ys: (num_tasks, tsz, out_dim)
    where tsz = inner_bsz*inner_steps + outer_bsz*outer_steps.
    Returns (meta_loss, outer_predictions[num_tasks, outer_size, out_dim]).
    """
    num_tasks, tsz, in_dim = xs.shape
    out_dim = ys.shape[-1]
    inner_size = inner_bsz * inner_steps
    outer_size = outer_bsz * outer_steps
    assert tsz == inner_size + outer_size, "tensor size mismatch"

    # build_iterator split: first inner_size rows -> inner, rest -> outer.
    # Pure slicing (metadata-cheap), no kernel round trip.
    x_inner = xs[:, :inner_size, :]
    y_inner = ys[:, :inner_size, :]
    x_outer = xs[:, inner_size:, :]
    y_outer = ys[:, inner_size:, :]

    kernel = _make_maml_kernel(in_dim, out_dim, inner_bsz, outer_bsz,
                               inner_steps, outer_steps, lr)

    flops = num_tasks * (
        inner_steps * (2 * inner_bsz * in_dim * out_dim      # forward matmul
                       + 2 * inner_bsz * in_dim * out_dim)   # grad_w matmul
        + outer_steps * 2 * outer_bsz * in_dim * out_dim)    # outer forward
    bytes_accessed = 4 * (x_inner.size + y_inner.size + x_outer.size +
                          y_outer.size + W.size + b.size +
                          num_tasks * 128 + num_tasks * outer_size * out_dim)

    losses, preds = pl.pallas_call(
        kernel,
        out_shape=(
            jax.ShapeDtypeStruct((num_tasks, 1, 128), jnp.float32),
            jax.ShapeDtypeStruct((num_tasks, outer_size, out_dim), jnp.float32),
        ),
        grid=(num_tasks,),
        in_specs=[
            pl.BlockSpec((None, inner_size, in_dim), lambda t: (t, 0, 0)),
            pl.BlockSpec((None, inner_size, out_dim), lambda t: (t, 0, 0)),
            pl.BlockSpec((None, outer_size, in_dim), lambda t: (t, 0, 0)),
            pl.BlockSpec((None, outer_size, out_dim), lambda t: (t, 0, 0)),
            pl.BlockSpec((in_dim, out_dim), lambda t: (0, 0)),   # W (resident)
            pl.BlockSpec((1, out_dim), lambda t: (0, 0)),        # b (resident)
        ],
        out_specs=(
            pl.BlockSpec((None, 1, 128), lambda t: (t, 0, 0)),
            pl.BlockSpec((None, outer_size, out_dim), lambda t: (t, 0, 0)),
        ),
        compiler_params=pltpu.CompilerParams(
            dimension_semantics=("parallel",)),
        cost_estimate=pl.CostEstimate(flops=flops, transcendentals=0,
                                      bytes_accessed=bytes_accessed),
    )(x_inner, y_inner, x_outer, y_outer, W, b)

    meta_loss = jnp.mean(losses[:, 0, 0])   # maml_outer_step: / num_tasks
    return meta_loss, preds


# ---------------- pure-JAX reference (mirrors the torch semantics) -----------
def maml_forward_ref(xs, ys, W, b, *, lr, inner_bsz, outer_bsz,
                     inner_steps, outer_steps):
    num_tasks = xs.shape[0]
    out_dim = ys.shape[-1]
    inner_size = inner_bsz * inner_steps
    gscale = 2.0 / (inner_bsz * out_dim)
    hp = jax.lax.Precision.HIGHEST
    task_losses, preds_all = [], []
    for t in range(num_tasks):
        w, bb = W, b
        inner_loss = jnp.float32(0.0)
        for s in range(inner_steps):
            xb = xs[t, s * inner_bsz:(s + 1) * inner_bsz]
            yb = ys[t, s * inner_bsz:(s + 1) * inner_bsz]
            pred = jnp.dot(xb, w, precision=hp) + bb
            err = pred - yb
            inner_loss = jnp.mean(err * err)
            gw = jnp.dot(xb.T, err, precision=hp) * gscale
            gb = jnp.sum(err, axis=0, keepdims=True) * gscale
            w = w - lr * gw
            bb = bb - lr * gb
        loss = inner_loss
        preds = []
        for s in range(outer_steps):
            lo = inner_size + s * outer_bsz
            xb = xs[t, lo:lo + outer_bsz]
            yb = ys[t, lo:lo + outer_bsz]
            pred = jnp.dot(xb, w, precision=hp) + bb
            preds.append(pred)
            loss = loss + jnp.mean((pred - yb) ** 2)
        task_losses.append(loss / outer_steps)
        preds_all.append(jnp.concatenate(preds, axis=0))
    return jnp.mean(jnp.stack(task_losses)), jnp.stack(preds_all)


if __name__ == "__main__":
    NUM_TASKS = 2
    IN_DIM = 32
    OUT_DIM = 8
    INNER_BSZ, OUTER_BSZ = 4, 4
    INNER_STEPS, OUTER_STEPS = 2, 2
    LR = 0.1
    TSZ = INNER_BSZ * INNER_STEPS + OUTER_BSZ * OUTER_STEPS   # 16

    key = jax.random.PRNGKey(0)
    k1, k2, k3, k4 = jax.random.split(key, 4)
    xs = jax.random.normal(k1, (NUM_TASKS, TSZ, IN_DIM), dtype=jnp.float32)
    ys = jax.random.normal(k2, (NUM_TASKS, TSZ, OUT_DIM), dtype=jnp.float32)
    W = 0.1 * jax.random.normal(k3, (IN_DIM, OUT_DIM), dtype=jnp.float32)
    b = 0.1 * jax.random.normal(k4, (1, OUT_DIM), dtype=jnp.float32)

    meta_loss, preds = maml_forward(
        xs, ys, W, b, lr=LR, inner_bsz=INNER_BSZ, outer_bsz=OUTER_BSZ,
        inner_steps=INNER_STEPS, outer_steps=OUTER_STEPS)
    meta_loss = jax.block_until_ready(meta_loss)
    preds = jax.block_until_ready(preds)

    ref_loss, ref_preds = maml_forward_ref(
        xs, ys, W, b, lr=LR, inner_bsz=INNER_BSZ, outer_bsz=OUTER_BSZ,
        inner_steps=INNER_STEPS, outer_steps=OUTER_STEPS)

    np.testing.assert_allclose(np.asarray(meta_loss), np.asarray(ref_loss),
                               rtol=5e-3, atol=1e-4)
    np.testing.assert_allclose(np.asarray(preds), np.asarray(ref_preds),
                               rtol=5e-3, atol=1e-4)

    print("KERNEL_OK")
</pallas_src>

<mosaic_0001>
module attributes {stable_mosaic.version = 11 : i64} {
  func.func @kernel(%arg0: i32, %arg1: memref<1x8x32xf32, #tpu.memory_space<vmem>>, %arg2: memref<1x8x8xf32, #tpu.memory_space<vmem>>, %arg3: memref<1x8x32xf32, #tpu.memory_space<vmem>>, %arg4: memref<1x8x8xf32, #tpu.memory_space<vmem>>, %arg5: memref<32x8xf32, #tpu.memory_space<vmem>>, %arg6: memref<1x8xf32, #tpu.memory_space<vmem>>, %arg7: memref<1x1x128xf32, #tpu.memory_space<vmem>>, %arg8: memref<1x8x8xf32, #tpu.memory_space<vmem>>) attributes {dimension_semantics = [#tpu.dimension_semantics<parallel>], iteration_bounds = array<i64: 2>, scalar_prefetch = 0 : i64, scratch_operands = 0 : i64, tpu.core_type = #tpu.core_type<tc>, window_params = [{transform_indices = @transform_0, window_bounds = array<i64: 1, 8, 32>}, {transform_indices = @transform_1, window_bounds = array<i64: 1, 8, 8>}, {transform_indices = @transform_2, window_bounds = array<i64: 1, 8, 32>}, {transform_indices = @transform_3, window_bounds = array<i64: 1, 8, 8>}, {pipeline_mode = #tpu.pipeline_mode<synchronous>, transform_indices = @transform_4, window_bounds = array<i64: 32, 8>}, {pipeline_mode = #tpu.pipeline_mode<synchronous>, transform_indices = @transform_5, window_bounds = array<i64: 1, 8>}, {transform_indices = @transform_6, window_bounds = array<i64: 1, 1, 128>}, {transform_indices = @transform_7, window_bounds = array<i64: 1, 8, 8>}]} {
    %c0 = arith.constant 0 : index
    %c0_0 = arith.constant 0 : index
    %0 = vector.load %arg5[%c0, %c0_0] : memref<32x8xf32, #tpu.memory_space<vmem>>, vector<32x8xf32>
    %c0_1 = arith.constant 0 : index
    %c0_2 = arith.constant 0 : index
    %1 = vector.load %arg6[%c0_1, %c0_2] : memref<1x8xf32, #tpu.memory_space<vmem>>, vector<1x8xf32>
    %c0_3 = arith.constant 0 : index
    %c0_4 = arith.constant 0 : index
    %c0_5 = arith.constant 0 : index
    %2 = vector.load %arg1[%c0_3, %c0_4, %c0_5] : memref<1x8x32xf32, #tpu.memory_space<vmem>>, vector<1x4x32xf32>
    %3 = vector.shape_cast %2 : vector<1x4x32xf32> to vector<4x32xf32>
    %c0_6 = arith.constant 0 : index
    %c0_7 = arith.constant 0 : index
    %c0_8 = arith.constant 0 : index
    %4 = vector.load %arg2[%c0_6, %c0_7, %c0_8] : memref<1x8x8xf32, #tpu.memory_space<vmem>>, vector<1x4x8xf32>
    %5 = vector.shape_cast %4 : vector<1x4x8xf32> to vector<4x8xf32>
    %cst = arith.constant dense<0.000000e+00> : vector<4x8xf32>
    %6 = tpu.matmul %3, %0, %cst {dimension_numbers = #tpu.dot_dimension_numbers<[1], [0], [0], [1], [0, 0, 1, 1], [], []>} : vector<4x32xf32>, vector<32x8xf32>, vector<4x8xf32> -> vector<4x8xf32>
    %7 = vector.broadcast %1 : vector<1x8xf32> to vector<4x8xf32>
    %8 = arith.addf %6, %7 : vector<4x8xf32>
    %9 = arith.subf %8, %5 : vector<4x8xf32>
    "tpu.trace_start"() <{level = 10 : i32, message = "bi,bo->io"}> : () -> ()
    %cst_9 = arith.constant dense<0.000000e+00> : vector<32x8xf32>
    %10 = tpu.matmul %3, %9, %cst_9 {dimension_numbers = #tpu.dot_dimension_numbers<[0], [0], [1], [1], [0, 1, 1, 1], [], []>} : vector<4x32xf32>, vector<4x8xf32>, vector<32x8xf32> -> vector<32x8xf32>
    "tpu.trace_stop"() : () -> ()
    %cst_10 = arith.constant 6.250000e-02 : f32
    %11 = vector.broadcast %cst_10 : f32 to vector<32x8xf32>
    %12 = arith.mulf %10, %11 : vector<32x8xf32>
    %cst_11 = arith.constant dense<0.000000e+00> : vector<8xf32>
    %13 = vector.multi_reduction <add>, %9, %cst_11 [0] : vector<4x8xf32> to vector<8xf32>
    %14 = vector.shape_cast %13 : vector<8xf32> to vector<1x8xf32>
    %cst_12 = arith.constant 6.250000e-02 : f32
    %15 = vector.broadcast %cst_12 : f32 to vector<1x8xf32>
    %16 = arith.mulf %14, %15 : vector<1x8xf32>
    %cst_13 = arith.constant 1.000000e-01 : f32
    %17 = vector.broadcast %cst_13 : f32 to vector<32x8xf32>
    %18 = arith.mulf %17, %12 : vector<32x8xf32>
    %19 = arith.subf %0, %18 : vector<32x8xf32>
    %cst_14 = arith.constant 1.000000e-01 : f32
    %20 = vector.broadcast %cst_14 : f32 to vector<1x8xf32>
    %21 = arith.mulf %20, %16 : vector<1x8xf32>
    %22 = arith.subf %1, %21 : vector<1x8xf32>
    %c0_15 = arith.constant 0 : index
    %c4 = arith.constant 4 : index
    %c0_16 = arith.constant 0 : index
    %23 = vector.load %arg1[%c0_15, %c4, %c0_16] : memref<1x8x32xf32, #tpu.memory_space<vmem>>, vector<1x4x32xf32>
    %24 = vector.shape_cast %23 : vector<1x4x32xf32> to vector<4x32xf32>
    %c0_17 = arith.constant 0 : index
    %c4_18 = arith.constant 4 : index
    %c0_19 = arith.constant 0 : index
    %25 = vector.load %arg2[%c0_17, %c4_18, %c0_19] : memref<1x8x8xf32, #tpu.memory_space<vmem>>, vector<1x4x8xf32>
    %26 = vector.shape_cast %25 : vector<1x4x8xf32> to vector<4x8xf32>
    %cst_20 = arith.constant dense<0.000000e+00> : vector<4x8xf32>
    %27 = tpu.matmul %24, %19, %cst_20 {dimension_numbers = #tpu.dot_dimension_numbers<[1], [0], [0], [1], [0, 0, 1, 1], [], []>} : vector<4x32xf32>, vector<32x8xf32>, vector<4x8xf32> -> vector<4x8xf32>
    %28 = vector.broadcast %22 : vector<1x8xf32> to vector<4x8xf32>
    %29 = arith.addf %27, %28 : vector<4x8xf32>
    %30 = arith.subf %29, %26 : vector<4x8xf32>
    %31 = arith.mulf %30, %30 : vector<4x8xf32>
    %32 = vector.shape_cast %31 : vector<4x8xf32> to vector<1x4x8xf32>
    %cst_21 = arith.constant dense<0.000000e+00> : vector<1xf32>
    %33 = vector.multi_reduction <add>, %32, %cst_21 [1, 2] : vector<1x4x8xf32> to vector<1xf32>
    %34 = vector.shape_cast %33 : vector<1xf32> to vector<1x1x1xf32>
    %35 = vector.extract %34[0, 0, 0] : f32 from vector<1x1x1xf32>
    %cst_22 = arith.constant 3.200000e+01 : f32
    %36 = arith.divf %35, %cst_22 : f32
    "tpu.trace_start"() <{level = 10 : i32, message = "bi,bo->io"}> : () -> ()
    %cst_23 = arith.constant dense<0.000000e+00> : vector<32x8xf32>
    %37 = tpu.matmul %24, %30, %cst_23 {dimension_numbers = #tpu.dot_dimension_numbers<[0], [0], [1], [1], [0, 1, 1, 1], [], []>} : vector<4x32xf32>, vector<4x8xf32>, vector<32x8xf32> -> vector<32x8xf32>
    "tpu.trace_stop"() : () -> ()
    %cst_24 = arith.constant 6.250000e-02 : f32
    %38 = vector.broadcast %cst_24 : f32 to vector<32x8xf32>
    %39 = arith.mulf %37, %38 : vector<32x8xf32>
    %cst_25 = arith.constant dense<0.000000e+00> : vector<8xf32>
    %40 = vector.multi_reduction <add>, %30, %cst_25 [0] : vector<4x8xf32> to vector<8xf32>
    %41 = vector.shape_cast %40 : vector<8xf32> to vector<1x8xf32>
    %cst_26 = arith.constant 6.250000e-02 : f32
    %42 = vector.broadcast %cst_26 : f32 to vector<1x8xf32>
    %43 = arith.mulf %41, %42 : vector<1x8xf32>
    %cst_27 = arith.constant 1.000000e-01 : f32
    %44 = vector.broadcast %cst_27 : f32 to vector<32x8xf32>
    %45 = arith.mulf %44, %39 : vector<32x8xf32>
    %46 = arith.subf %19, %45 : vector<32x8xf32>
    %cst_28 = arith.constant 1.000000e-01 : f32
    %47 = vector.broadcast %cst_28 : f32 to vector<1x8xf32>
    %48 = arith.mulf %47, %43 : vector<1x8xf32>
    %49 = arith.subf %22, %48 : vector<1x8xf32>
    %c0_29 = arith.constant 0 : index
    %c0_30 = arith.constant 0 : index
    %c0_31 = arith.constant 0 : index
    %50 = vector.load %arg3[%c0_29, %c0_30, %c0_31] : memref<1x8x32xf32, #tpu.memory_space<vmem>>, vector<1x4x32xf32>
    %51 = vector.shape_cast %50 : vector<1x4x32xf32> to vector<4x32xf32>
    %c0_32 = arith.constant 0 : index
    %c0_33 = arith.constant 0 : index
    %c0_34 = arith.constant 0 : index
    %52 = vector.load %arg4[%c0_32, %c0_33, %c0_34] : memref<1x8x8xf32, #tpu.memory_space<vmem>>, vector<1x4x8xf32>
    %53 = vector.shape_cast %52 : vector<1x4x8xf32> to vector<4x8xf32>
    %cst_35 = arith.constant dense<0.000000e+00> : vector<4x8xf32>
    %54 = tpu.matmul %51, %46, %cst_35 {dimension_numbers = #tpu.dot_dimension_numbers<[1], [0], [0], [1], [0, 0, 1, 1], [], []>} : vector<4x32xf32>, vector<32x8xf32>, vector<4x8xf32> -> vector<4x8xf32>
    %55 = vector.broadcast %49 : vector<1x8xf32> to vector<4x8xf32>
    %56 = arith.addf %54, %55 : vector<4x8xf32>
    %c0_36 = arith.constant 0 : index
    %c0_37 = arith.constant 0 : index
    %c0_38 = arith.constant 0 : index
    %57 = vector.load %arg8[%c0_36, %c0_37, %c0_38] : memref<1x8x8xf32, #tpu.memory_space<vmem>>, vector<1x4x8xf32>
    %58 = vector.shape_cast %57 : vector<1x4x8xf32> to vector<4x8xf32>
    %59 = vector.shape_cast %56 : vector<4x8xf32> to vector<1x4x8xf32>
    tpu.vector_store %arg8[%c0_36, %c0_37, %c0_38], %59 {strides = array<i32>} : memref<1x8x8xf32, #tpu.memory_space<vmem>>, vector<1x4x8xf32>,
    %60 = arith.subf %56, %53 : vector<4x8xf32>
    %61 = arith.mulf %60, %60 : vector<4x8xf32>
    %62 = vector.shape_cast %61 : vector<4x8xf32> to vector<1x4x8xf32>
    %cst_39 = arith.constant dense<0.000000e+00> : vector<1xf32>
    %63 = vector.multi_reduction <add>, %62, %cst_39 [1, 2] : vector<1x4x8xf32> to vector<1xf32>
    %64 = vector.shape_cast %63 : vector<1xf32> to vector<1x1x1xf32>
    %65 = vector.extract %64[0, 0, 0] : f32 from vector<1x1x1xf32>
    %cst_40 = arith.constant 3.200000e+01 : f32
    %66 = arith.divf %65, %cst_40 : f32
    %67 = arith.addf %36, %66 : f32
    %c0_41 = arith.constant 0 : index
    %c4_42 = arith.constant 4 : index
    %c0_43 = arith.constant 0 : index
    %68 = vector.load %arg3[%c0_41, %c4_42, %c0_43] : memref<1x8x32xf32, #tpu.memory_space<vmem>>, vector<1x4x32xf32>
    %69 = vector.shape_cast %68 : vector<1x4x32xf32> to vector<4x32xf32>
    %c0_44 = arith.constant 0 : index
    %c4_45 = arith.constant 4 : index
    %c0_46 = arith.constant 0 : index
    %70 = vector.load %arg4[%c0_44, %c4_45, %c0_46] : memref<1x8x8xf32, #tpu.memory_space<vmem>>, vector<1x4x8xf32>
    %71 = vector.shape_cast %70 : vector<1x4x8xf32> to vector<4x8xf32>
    %cst_47 = arith.constant dense<0.000000e+00> : vector<4x8xf32>
    %72 = tpu.matmul %69, %46, %cst_47 {dimension_numbers = #tpu.dot_dimension_numbers<[1], [0], [0], [1], [0, 0, 1, 1], [], []>} : vector<4x32xf32>, vector<32x8xf32>, vector<4x8xf32> -> vector<4x8xf32>
    %73 = vector.broadcast %49 : vector<1x8xf32> to vector<4x8xf32>
    %74 = arith.addf %72, %73 : vector<4x8xf32>
    %c0_48 = arith.constant 0 : index
    %c4_49 = arith.constant 4 : index
    %c0_50 = arith.constant 0 : index
    %75 = vector.load %arg8[%c0_48, %c4_49, %c0_50] : memref<1x8x8xf32, #tpu.memory_space<vmem>>, vector<1x4x8xf32>
    %76 = vector.shape_cast %75 : vector<1x4x8xf32> to vector<4x8xf32>
    %77 = vector.shape_cast %74 : vector<4x8xf32> to vector<1x4x8xf32>
    tpu.vector_store %arg8[%c0_48, %c4_49, %c0_50], %77 {strides = array<i32>} : memref<1x8x8xf32, #tpu.memory_space<vmem>>, vector<1x4x8xf32>,
    %78 = arith.subf %74, %71 : vector<4x8xf32>
    %79 = arith.mulf %78, %78 : vector<4x8xf32>
    %80 = vector.shape_cast %79 : vector<4x8xf32> to vector<1x4x8xf32>
    %cst_51 = arith.constant dense<0.000000e+00> : vector<1xf32>
    %81 = vector.multi_reduction <add>, %80, %cst_51 [1, 2] : vector<1x4x8xf32> to vector<1xf32>
    %82 = vector.shape_cast %81 : vector<1xf32> to vector<1x1x1xf32>
    %83 = vector.extract %82[0, 0, 0] : f32 from vector<1x1x1xf32>
    %cst_52 = arith.constant 3.200000e+01 : f32
    %84 = arith.divf %83, %cst_52 : f32
    %85 = arith.addf %67, %84 : f32
    %cst_53 = arith.constant 2.000000e+00 : f32
    %86 = arith.divf %85, %cst_53 : f32
    %cst_54 = arith.constant 1.000000e+00 : f32
    %87 = vector.broadcast %cst_54 : f32 to vector<1x128xf32>
    %88 = vector.broadcast %86 : f32 to vector<1x128xf32>
    %89 = arith.mulf %88, %87 : vector<1x128xf32>
    %c0_55 = arith.constant 0 : index
    %c0_56 = arith.constant 0 : index
    %c0_57 = arith.constant 0 : index
    %90 = vector.load %arg7[%c0_55, %c0_56, %c0_57] : memref<1x1x128xf32, #tpu.memory_space<vmem>>, vector<1x1x128xf32>
    %91 = vector.shape_cast %90 : vector<1x1x128xf32> to vector<1x128xf32>
    %92 = vector.shape_cast %89 : vector<1x128xf32> to vector<1x1x128xf32>
    tpu.vector_store %arg7[%c0_55, %c0_56, %c0_57], %92 {strides = array<i32>} : memref<1x1x128xf32, #tpu.memory_space<vmem>>, vector<1x1x128xf32>,
    return
  }
  func.func @transform_0(%arg0: i32) -> (i32, i32, i32) {
    %c0_i32 = arith.constant 0 : i32
    %c0_i32_0 = arith.constant 0 : i32
    %c0_i32_1 = arith.constant 0 : i32
    return %arg0, %c0_i32, %c0_i32_0 : i32, i32, i32
  }
  func.func @transform_1(%arg0: i32) -> (i32, i32, i32) {
    %c0_i32 = arith.constant 0 : i32
    %c0_i32_0 = arith.constant 0 : i32
    %c0_i32_1 = arith.constant 0 : i32
    return %arg0, %c0_i32, %c0_i32_0 : i32, i32, i32
  }
  func.func @transform_2(%arg0: i32) -> (i32, i32, i32) {
    %c0_i32 = arith.constant 0 : i32
    %c0_i32_0 = arith.constant 0 : i32
    %c0_i32_1 = arith.constant 0 : i32
    return %arg0, %c0_i32, %c0_i32_0 : i32, i32, i32
  }
  func.func @transform_3(%arg0: i32) -> (i32, i32, i32) {
    %c0_i32 = arith.constant 0 : i32
    %c0_i32_0 = arith.constant 0 : i32
    %c0_i32_1 = arith.constant 0 : i32
    return %arg0, %c0_i32, %c0_i32_0 : i32, i32, i32
  }
  func.func @transform_4(%arg0: i32) -> (i32, i32) {
    %c0_i32 = arith.constant 0 : i32
    %c0_i32_0 = arith.constant 0 : i32
    %c0_i32_1 = arith.constant 0 : i32
    return %c0_i32, %c0_i32_0 : i32, i32
  }
  func.func @transform_5(%arg0: i32) -> (i32, i32) {
    %c0_i32 = arith.constant 0 : i32
    %c0_i32_0 = arith.constant 0 : i32
    %c0_i32_1 = arith.constant 0 : i32
    return %c0_i32, %c0_i32_0 : i32, i32
  }
  func.func @transform_6(%arg0: i32) -> (i32, i32, i32) {
    %c0_i32 = arith.constant 0 : i32
    %c0_i32_0 = arith.constant 0 : i32
    %c0_i32_1 = arith.constant 0 : i32
    return %arg0, %c0_i32, %c0_i32_0 : i32, i32, i32
  }
  func.func @transform_7(%arg0: i32) -> (i32, i32, i32) {
    %c0_i32 = arith.constant 0 : i32
    %c0_i32_0 = arith.constant 0 : i32
    %c0_i32_1 = arith.constant 0 : i32
    return %arg0, %c0_i32, %c0_i32_0 : i32, i32, i32
  }
}

</mosaic_0001>

<llo_original>
// kernel: tpu_custom_call.1
$region0: #{tpu_custom_call.1}
  #allocation0 [shape = 'u32[]', space=smem, size = 0x4, offset = 0x4, fixed_abs, tag = 'smem constant byte address 0x4 - core index']
  #allocation1 [shape = 'u32[144,128]{1,0:T(1,128)}', space=vmem, size = 0x12000, scoped, tag = 'internal scratch']
  %s0 = inlined_call_operand.vmem [shape: f32[2,8,32], index: 0, kind: input, shape index: {}]
  %s1 = inlined_call_operand.vmem [shape: f32[2,8,8], index: 1, kind: input, shape index: {}]
  %s2 = inlined_call_operand.hbm [shape: f32[2,8,32], index: 2, kind: input, shape index: {}]
  %s3 = inlined_call_operand.vmem [shape: f32[2,8,8], index: 3, kind: input, shape index: {}]
  %s4 = inlined_call_operand.vmem [shape: f32[32,8], index: 4, kind: input, shape index: {}]
  %s5 = inlined_call_operand.vmem [shape: f32[1,8], index: 5, kind: input, shape index: {}]
  %s6 = inlined_call_operand.hbm [shape: f32[2,1,128], index: 6, kind: output, shape index: {0}]
  %s7 = inlined_call_operand.hbm [shape: f32[2,8,8], index: 7, kind: output, shape index: {1}]
  %8 = xla_tuple %s6, %s7
  %s9 = sld [smem:[#allocation0]]
  $region69: #{tpu_custom_call.1} parent=0
    _
  %s11 = ssub.s32 1, %s9
  %s12 = scalar_select 0, %s11, %s9
  $region1: #{tpu_custom_call.1} parent=0
    #allocation2 [shape = 'u8[8192]{0}', space=vmem, size = 0x2000, scoped, tag = 'input window, operand 2']
    #allocation3 [shape = 's32[2]{0}', space=sflag, size = 0x8, scoped, tag = 'scoped memory for tpu_custom_call.1']
    #allocation4 [shape = 's32[2]{0}', space=sflag, size = 0x8, scoped, tag = 'scoped memory for tpu_custom_call.1']
    #allocation5 [shape = 'u8[1024]{0}', space=vmem, size = 0x400, scoped, tag = 'output window, operand 0']
    #allocation6 [shape = 'u8[8192]{0}', space=vmem, size = 0x2000, scoped, tag = 'output window, operand 1']
    #allocation7 [shape = 's32[2]{0}', space=sflag, size = 0x8, scoped, tag = 'scoped memory for tpu_custom_call.1']
    %13 = vsyncpa [#allocation3], 0
    %s14 = scalar_lea.sflag [#allocation3], 1
    %15 = vsyncpa %s14, 0
    %16 = vsyncpa [#allocation4], 0
    %s17 = scalar_lea.sflag [#allocation4], 1
    %18 = vsyncpa %s17, 0
    %19 = vsyncpa [#allocation7], 0
    %s20 = scalar_lea.sflag [#allocation7], 1
    %21 = vsyncpa %s20, 0
    loop: start=0, step=1, limit=4
    $region2: #{tpu_custom_call.1} parent=1 // loop_pre_header
      _
    $region3: #{tpu_custom_call.1} parent=1 // loop_header
      %s23 = sphi 0, %s27
      %p24 = scmp.ge.s32.totalorder %s23, 4
      %s33 = sphi 0, %s35
      %s36 = sphi 0, %s33
      %s37 = sphi 0, %s36
      %s53 = sphi 0, %s37
      %s59 = sphi 0, %s61
      %s62 = sphi 0, %s59
      %s63 = sphi 0, %s62
      %s79 = sphi 0, %s63
      %s85 = sphi 0, %s87
      %s88 = sphi 0, %s85
      %s89 = sphi 0, %s88
      %s105 = sphi 0, %s89
      %s111 = sphi 0, %s113
      %s114 = sphi 0, %s111
      %s115 = sphi 0, %s114
      %s131 = sphi 0, %s115
      %s135 = sphi 0, %s135
      %s137 = sphi 0, %s135
      %s138 = sphi 0, %s137
      %s152 = sphi 0, %s138
      %s156 = sphi 0, %s156
      %s158 = sphi 0, %s156
      %s159 = sphi 0, %s158
      %s173 = sphi 0, %s159
      %s179 = sphi 0, %s181
      %s182 = sphi 0, %s179
      %s183 = sphi 0, %s182
      %s199 = sphi 0, %s183
      %s205 = sphi 0, %s207
      %s208 = sphi 0, %s205
      %s209 = sphi 0, %s208
      %s225 = sphi 0, %s209
    $region4: #{tpu_custom_call.1} parent=1 // loop_header_branch
      %26 = sbr.rel (%p24) target = $region8
    $region5: #{tpu_custom_call.1} parent=1 // loop_body
      %s28 = ssub.s32 %s23, 1
      %s29 = ssub.s32 %s23, 2
      %s30 = sadd.s32 %s23, 1
      %s31 = ssub.s32 %s23, %s30
      %p32 = scmp.eq.s32.totalorder %s31, 0
      %s34 = sadd.s32 %s33, 1
      %s35 = scalar_select %p32, %s33, %s34
      %p38 = pneg %p32
      %p39 = scmp.eq.s32.totalorder %s23, 1
      %p40 = por %p38, %p39
      %p41 = scmp.ne.s32.totalorder %s33, %s36
      %p42 = scmp.eq.s32.totalorder %s23, 0
      %p43 = por %p41, %p42
      %p44 = scmp.ne.s32.totalorder %s33, %s36
      %p45 = scmp.eq.s32.totalorder %s28, 1
      %p46 = por %p44, %p45
      %p47 = scmp.ne.s32.totalorder %s36, %s37
      %p48 = scmp.eq.s32.totalorder %s28, 0
      %p49 = por %p47, %p48
      %p50 = scmp.ne.s32.totalorder %s36, %s37
      %p51 = scmp.eq.s32.totalorder %s29, 1
      %p52 = por %p50, %p51
      %p54 = scmp.ne.s32.totalorder %s37, %s53
      %p55 = scmp.eq.s32.totalorder %s29, 0
      %p56 = por %p54, %p55
      %s57 = ssub.s32 %s23, %s30
      %p58 = scmp.eq.s32.totalorder %s57, 0
      %s60 = sadd.s32 %s59, 1
      %s61 = scalar_select %p58, %s59, %s60
      %p64 = pneg %p58
      %p65 = scmp.eq.s32.totalorder %s23, 1
      %p66 = por %p64, %p65
      %p67 = scmp.ne.s32.totalorder %s59, %s62
      %p68 = scmp.eq.s32.totalorder %s23, 0
      %p69 = por %p67, %p68
      %p70 = scmp.ne.s32.totalorder %s59, %s62
      %p71 = scmp.eq.s32.totalorder %s28, 1
      %p72 = por %p70, %p71
      %p73 = scmp.ne.s32.totalorder %s62, %s63
      %p74 = scmp.eq.s32.totalorder %s28, 0
      %p75 = por %p73, %p74
      %p76 = scmp.ne.s32.totalorder %s62, %s63
      %p77 = scmp.eq.s32.totalorder %s29, 1
      %p78 = por %p76, %p77
      %p80 = scmp.ne.s32.totalorder %s63, %s79
      %p81 = scmp.eq.s32.totalorder %s29, 0
      %p82 = por %p80, %p81
      %s83 = ssub.s32 %s23, %s30
      %p84 = scmp.eq.s32.totalorder %s83, 0
      %s86 = sadd.s32 %s85, 1
      %s87 = scalar_select %p84, %s85, %s86
      %p90 = pneg %p84
      %p91 = scmp.eq.s32.totalorder %s23, 1
      %p92 = por %p90, %p91
      %p93 = scmp.ne.s32.totalorder %s85, %s88
      %p94 = scmp.eq.s32.totalorder %s23, 0
      %p95 = por %p93, %p94
      %p96 = scmp.ne.s32.totalorder %s85, %s88
      %p97 = scmp.eq.s32.totalorder %s28, 1
      %p98 = por %p96, %p97
      %p99 = scmp.ne.s32.totalorder %s88, %s89
      %p100 = scmp.eq.s32.totalorder %s28, 0
      %p101 = por %p99, %p100
      %p102 = scmp.ne.s32.totalorder %s88, %s89
      %p103 = scmp.eq.s32.totalorder %s29, 1
      %p104 = por %p102, %p103
      %p106 = scmp.ne.s32.totalorder %s89, %s105
      %p107 = scmp.eq.s32.totalorder %s29, 0
      %p108 = por %p106, %p107
      %s109 = ssub.s32 %s23, %s30
      %p110 = scmp.eq.s32.totalorder %s109, 0
      %s112 = sadd.s32 %s111, 1
      %s113 = scalar_select %p110, %s111, %s112
      %p116 = pneg %p110
      %p117 = scmp.eq.s32.totalorder %s23, 1
      %p118 = por %p116, %p117
      %p119 = scmp.ne.s32.totalorder %s111, %s114
      %p120 = scmp.eq.s32.totalorder %s23, 0
      %p121 = por %p119, %p120
      %p122 = scmp.ne.s32.totalorder %s111, %s114
      %p123 = scmp.eq.s32.totalorder %s28, 1
      %p124 = por %p122, %p123
      %p125 = scmp.ne.s32.totalorder %s114, %s115
      %p126 = scmp.eq.s32.totalorder %s28, 0
      %p127 = por %p125, %p126
      %p128 = scmp.ne.s32.totalorder %s114, %s115
      %p129 = scmp.eq.s32.totalorder %s29, 1
      %p130 = por %p128, %p129
      %p132 = scmp.ne.s32.totalorder %s115, %s131
      %p133 = scmp.eq.s32.totalorder %s29, 0
      %p134 = por %p132, %p133
      %s136 = sadd.s32 %s135, 1
      %p139 = scmp.eq.s32.totalorder %s23, 1
      %p140 = scmp.ne.s32.totalorder %s135, %s137
      %p141 = scmp.eq.s32.totalorder %s23, 0
      %p142 = por %p140, %p141
      %p143 = scmp.ne.s32.totalorder %s135, %s137
      %p144 = scmp.eq.s32.totalorder %s28, 1
      %p145 = por %p143, %p144
      %p146 = scmp.ne.s32.totalorder %s137, %s138
      %p147 = scmp.eq.s32.totalorder %s28, 0
      %p148 = por %p146, %p147
      %p149 = scmp.ne.s32.totalorder %s137, %s138
      %p150 = scmp.eq.s32.totalorder %s29, 1
      %p151 = por %p149, %p150
      %p153 = scmp.ne.s32.totalorder %s138, %s152
      %p154 = scmp.eq.s32.totalorder %s29, 0
      %p155 = por %p153, %p154
      %s157 = sadd.s32 %s156, 1
      %p160 = scmp.eq.s32.totalorder %s23, 1
      %p161 = scmp.ne.s32.totalorder %s156, %s158
      %p162 = scmp.eq.s32.totalorder %s23, 0
      %p163 = por %p161, %p162
      %p164 = scmp.ne.s32.totalorder %s156, %s158
      %p165 = scmp.eq.s32.totalorder %s28, 1
      %p166 = por %p164, %p165
      %p167 = scmp.ne.s32.totalorder %s158, %s159
      %p168 = scmp.eq.s32.totalorder %s28, 0
      %p169 = por %p167, %p168
      %p170 = scmp.ne.s32.totalorder %s158, %s159
      %p171 = scmp.eq.s32.totalorder %s29, 1
      %p172 = por %p170, %p171
      %p174 = scmp.ne.s32.totalorder %s159, %s173
      %p175 = scmp.eq.s32.totalorder %s29, 0
      %p176 = por %p174, %p175
      %s177 = ssub.s32 %s23, %s30
      %p178 = scmp.eq.s32.totalorder %s177, 0
      %s180 = sadd.s32 %s179, 1
      %s181 = scalar_select %p178, %s179, %s180
      %p184 = pneg %p178
      %p185 = scmp.eq.s32.totalorder %s23, 1
      %p186 = por %p184, %p185
      %p187 = scmp.ne.s32.totalorder %s179, %s182
      %p188 = scmp.eq.s32.totalorder %s23, 0
      %p189 = por %p187, %p188
      %p190 = scmp.ne.s32.totalorder %s179, %s182
      %p191 = scmp.eq.s32.totalorder %s28, 1
      %p192 = por %p190, %p191
      %p193 = scmp.ne.s32.totalorder %s182, %s183
      %p194 = scmp.eq.s32.totalorder %s28, 0
      %p195 = por %p193, %p194
      %p196 = scmp.ne.s32.totalorder %s182, %s183
      %p197 = scmp.eq.s32.totalorder %s29, 1
      %p198 = por %p196, %p197
      %p200 = scmp.ne.s32.totalorder %s183, %s199
      %p201 = scmp.eq.s32.totalorder %s29, 0
      %p202 = por %p200, %p201
      %s203 = ssub.s32 %s23, %s30
      %p204 = scmp.eq.s32.totalorder %s203, 0
      %s206 = sadd.s32 %s205, 1
      %s207 = scalar_select %p204, %s205, %s206
      %p210 = pneg %p204
      %p211 = scmp.eq.s32.totalorder %s23, 1
      %p212 = por %p210, %p211
      %p213 = scmp.ne.s32.totalorder %s205, %s208
      %p214 = scmp.eq.s32.totalorder %s23, 0
      %p215 = por %p213, %p214
      %p216 = scmp.ne.s32.totalorder %s205, %s208
      %p217 = scmp.eq.s32.totalorder %s28, 1
      %p218 = por %p216, %p217
      %p219 = scmp.ne.s32.totalorder %s208, %s209
      %p220 = scmp.eq.s32.totalorder %s28, 0
      %p221 = por %p219, %p220
      %p222 = scmp.ne.s32.totalorder %s208, %s209
      %p223 = scmp.eq.s32.totalorder %s29, 1
      %p224 = por %p222, %p223
      %p226 = scmp.ne.s32.totalorder %s209, %s225
      %p227 = scmp.eq.s32.totalorder %s29, 0
      %p228 = por %p226, %p227
      %p229 = scmp.le.s32.totalorder 1, %s23
      %p230 = scmp.lt.s32.totalorder %s23, 3
      %p231 = pnand %p229, %p230
      %p232 = pneg %p231
      // Predicated region
      $region9: #{tpu_custom_call.1} parent=5 // pred_check
        _
      $region10: #{tpu_custom_call.1} parent=5 // pred_check_branch
        %234 = sbr.rel (%p231) target = $region12
      $region11: #{tpu_custom_call.1} parent=5 // pred_region
        %s235 = ssub.s32 %s23, 1
        // Predicated region
        $region13: #{tpu_custom_call.1} parent=11 // pred_check
          %p236 = pneg %p148
        $region14: #{tpu_custom_call.1} parent=11 // pred_check_branch
          %238 = sbr.rel (%p236) target = $region16
        $region15: #{tpu_custom_call.1} parent=11 // pred_region
          _
        $region16: #{tpu_custom_call.1} parent=11 // pred_fallthru
          _
        // Predicated region
        $region17: #{tpu_custom_call.1} parent=11 // pred_check
          %p239 = pneg %p169
        $region18: #{tpu_custom_call.1} parent=11 // pred_check_branch
          %241 = sbr.rel (%p239) target = $region20
        $region19: #{tpu_custom_call.1} parent=11 // pred_region
          _
        $region20: #{tpu_custom_call.1} parent=11 // pred_fallthru
          _
      $region12: #{tpu_custom_call.1} parent=5 // pred_fallthru
        _
      %p242 = scmp.lt.s32.totalorder %s23, 2
      // Predicated region
      $region21: #{tpu_custom_call.1} parent=5 // pred_check
        %p243 = pneg %p242
      $region22: #{tpu_custom_call.1} parent=5 // pred_check_branch
        %245 = sbr.rel (%p243) target = $region24
      $region23: #{tpu_custom_call.1} parent=5 // pred_region
        // Predicated region
        $region25: #{tpu_custom_call.1} parent=23 // pred_check
          %p246 = pneg %p43
        $region26: #{tpu_custom_call.1} parent=23 // pred_check_branch
          %248 = sbr.rel (%p246) target = $region28
        $region27: #{tpu_custom_call.1} parent=23 // pred_region
          %p249 = scmp.lt.s32.totalorder %s23, 1
          %s250 = scalar_select %p249, %s23, 1
          %s251 = smul.addr %s250, 8
          %s252 = scalar_lea.vmem %s0, %s251
        $region28: #{tpu_custom_call.1} parent=23 // pred_fallthru
          _
        // Predicated region
        $region29: #{tpu_custom_call.1} parent=23 // pred_check
          %p253 = pneg %p69
        $region30: #{tpu_custom_call.1} parent=23 // pred_check_branch
          %255 = sbr.rel (%p253) target = $region32
        $region31: #{tpu_custom_call.1} parent=23 // pred_region
          %p256 = scmp.lt.s32.totalorder %s23, 1
          %s257 = scalar_select %p256, %s23, 1
          %s258 = smul.addr %s257, 8
          %s259 = scalar_lea.vmem %s1, %s258
        $region32: #{tpu_custom_call.1} parent=23 // pred_fallthru
          _
        // Predicated region
        $region33: #{tpu_custom_call.1} parent=23 // pred_check
          %p260 = pneg %p95
        $region34: #{tpu_custom_call.1} parent=23 // pred_check_branch
          %262 = sbr.rel (%p260) target = $region36
        $region35: #{tpu_custom_call.1} parent=23 // pred_region
          %s263 = sand.u32 %s85, 1
          %s264 = scalar_lea.sflag [#allocation3], %s263
          %s265 = sand.u32 %s85, 1
          %s266 = smul.addr %s265, 8
          %s267 = scalar_lea.vmem [#allocation2], %s266
          %s269 = ssub.s32 128, 128
          %270 = vsyncadd %s264, %s269
          %s271 = smul.addr %s23, 128
          %s272 = scalar_lea.hbm %s2, %s271
          %s274 = sshll.u32 %s267, 4
          %s275 = int_to_ptr.vmem [resolvable:$true] %s274
          %277 = dma.hbm_to_vmem [thread:$0]  %s272, 128, %s275, %s264
        $region36: #{tpu_custom_call.1} parent=23 // pred_fallthru
          _
        // Predicated region
        $region37: #{tpu_custom_call.1} parent=23 // pred_check
          %p278 = pneg %p121
        $region38: #{tpu_custom_call.1} parent=23 // pred_check_branch
          %280 = sbr.rel (%p278) target = $region40
        $region39: #{tpu_custom_call.1} parent=23 // pred_region
          %p281 = scmp.lt.s32.totalorder %s23, 1
          %s282 = scalar_select %p281, %s23, 1
          %s283 = smul.addr %s282, 8
          %s284 = scalar_lea.vmem %s3, %s283
        $region40: #{tpu_custom_call.1} parent=23 // pred_fallthru
          _
      $region24: #{tpu_custom_call.1} parent=5 // pred_fallthru
        _
      %p285 = scmp.le.s32.totalorder 1, %s23
      %p286 = scmp.lt.s32.totalorder %s23, 3
      %p287 = pnand %p285, %p286
      %p288 = pneg %p287
      // Predicated region
      $region41: #{tpu_custom_call.1} parent=5 // pred_check
        _
      $region42: #{tpu_custom_call.1} parent=5 // pred_check_branch
        %290 = sbr.rel (%p287) target = $region44
      $region43: #{tpu_custom_call.1} parent=5 // pred_region
        %s291 = ssub.s32 %s23, 1
        %s292 = sand.u32 %s88, 1
        %s293 = scalar_lea.sflag [#allocation3], %s292
        %s294 = sand.u32 %s88, 1
        %s295 = smul.addr %s294, 8
        %s296 = scalar_lea.vmem [#allocation2], %s295
        // Predicated region
        $region45: #{tpu_custom_call.1} parent=43 // pred_check
          %p297 = pneg %p101
        $region46: #{tpu_custom_call.1} parent=43 // pred_check_branch
          %299 = sbr.rel (%p297) target = $region48
        $region47: #{tpu_custom_call.1} parent=43 // pred_region
          %300 = dma.done %s293, 128
        $region48: #{tpu_custom_call.1} parent=43 // pred_fallthru
          _
        %p301 = scmp.lt.s32.totalorder %s28, 1
        %s302 = scalar_select %p301, %s28, 1
        %s303 = smul.addr %s302, 8
        %s304 = scalar_lea.vmem %s0, %s303
        %p305 = pneg %p49
        %p306 = pneg %p46
        %p307 = scmp.lt.s32.totalorder %s28, 1
        %s308 = scalar_select %p307, %s28, 1
        %s309 = smul.addr %s308, 8
        %s310 = scalar_lea.vmem %s1, %s309
        %p311 = pneg %p75
        %p312 = pneg %p72
        %s313 = sand.u32 %s88, 1
        %s314 = scalar_lea.sflag [#allocation3], %s313
        %s315 = sand.u32 %s88, 1
        %s316 = smul.addr %s315, 8
        %s317 = scalar_lea.vmem [#allocation2], %s316
        %p318 = pneg %p101
        %p319 = pneg %p98
        %p320 = scmp.lt.s32.totalorder %s28, 1
        %s321 = scalar_select %p320, %s28, 1
        %s322 = smul.addr %s321, 8
        %s323 = scalar_lea.vmem %s3, %s322
        %p324 = pneg %p127
        %p325 = pneg %p124
        %p326 = pneg %p148
        %p327 = pneg %p145
        %p328 = pneg %p169
        %p329 = pneg %p166
        %p330 = pneg %p195
        %p331 = pneg %p192
        %s332 = sand.u32 %s182, 1
        %s333 = scalar_lea.sflag [#allocation4], %s332
        %s334 = sand.u32 %s182, 1
        %s335 = scalar_lea.vmem [#allocation5], %s334
        %p336 = pneg %p221
        %p337 = pneg %p218
        %s338 = sand.u32 %s208, 1
        %s339 = scalar_lea.sflag [#allocation7], %s338
        %s340 = sand.u32 %s208, 1
        %s341 = smul.addr %s340, 8
        %s342 = scalar_lea.vmem [#allocation6], %s341
        %p343 = scmp.lt.s32.totalorder %s28, 1
        %s344 = scalar_select %p343, %s28, 1
        %s345 = smul.addr %s344, 8
        %s346 = scalar_lea.vmem %s0, %s345
        %p347 = scmp.lt.s32.totalorder %s28, 1
        %s348 = scalar_select %p347, %s28, 1
        %s349 = smul.addr %s348, 8
        %s350 = scalar_lea.vmem %s1, %s349
        %p351 = scmp.lt.s32.totalorder %s28, 1
        %s352 = scalar_select %p351, %s28, 1
        %s353 = smul.addr %s352, 8
        %s354 = scalar_lea.vmem %s3, %s353
        %v355 = vld [vmem:[%s4] sm:$0xff]
        %v356 = vld [vmem:[%s4 + $0x8] sm:$0xff]
        %v357 = vld [vmem:[%s4 + $0x10] sm:$0xff]
        %v358 = vld [vmem:[%s4 + $0x18] sm:$0xff]
        %v359 = vld [vmem:[%s5] sm:$0x1]
        %v360 = vld [vmem:[%s346] sm:$0xf]
        %v361 = vld [vmem:[%s350] sm:$0xf]
        %v363 = vlaneseq
        %v364 = vshrl.u32 %v363, 7
        %v365 = vsub.s32 0, %v364
        %v366 = vrot.slane %v359, %v365
        %vm368 = vcmask 261120
        %v370 = vsel %vm368, %v360, 0
        %372 = vmatprep.subr.mxu0 0.0
        %373 = vmatpush1.msra.mxu0 %v355
        %374 = vmatprep.subr.mxu0 0.0
        %375 = vmatpush1.msra.mxu0 %v356
        %376 = vmatprep.subr.mxu0 0.0
        %377 = vmatpush1.msra.mxu0 %v357
        %378 = vmatprep.subr.mxu0 0.0
        %379 = vmatpush1.msra.mxu0 %v358
        %380 = vmatprep.subr.mxu0 0.0
        %381 = vmatpush1.msra.mxu0 0.0
        %382 = vmatprep.subr.mxu0 0.0
        %383 = vmatpush1.msra.mxu0 0.0
        %384 = vmatprep.subr.mxu0 0.0
        %385 = vmatpush1.msra.mxu0 0.0
        %386 = vmatprep.subr.mxu0 0.0
        %387 = vmatpush1.msra.mxu0 0.0
        %388 = vmatprep.subr.mxu0 0.0
        %389 = vmatpush1.msra.mxu0 0.0
        %390 = vmatprep.subr.mxu0 0.0
        %391 = vmatpush1.msra.mxu0 0.0
        %392 = vmatprep.subr.mxu0 0.0
        %393 = vmatpush1.msra.mxu0 0.0
        %394 = vmatprep.subr.mxu0 0.0
        %395 = vmatpush1.msra.mxu0 0.0
        %396 = vmatprep.subr.mxu0 0.0
        %397 = vmatpush1.msra.mxu0 0.0
        %398 = vmatprep.subr.mxu0 0.0
        %399 = vmatpush1.msra.mxu0 0.0
        %400 = vmatprep.subr.mxu0 0.0
        %401 = vmatpush1.msra.mxu0 0.0
        %402 = vmatprep.subr.mxu0 0.0
        %403 = vmatpush1.msra.mxu0 0.0
        %404 = vmatprep.subr.mxu0 0.0
        %405 = vmatpush1.msra.mxu0 0.0
        %406 = vmatprep.subr.mxu0 0.0
        %407 = vmatpush1.msra.mxu0 0.0
        %408 = vmatprep.subr.mxu0 0.0
        %409 = vmatpush1.msra.mxu0 0.0
        %410 = vmatprep.subr.mxu0 0.0
        %411 = vmatpush1.msra.mxu0 0.0
        %412 = vmatprep.subr.mxu0 0.0
        %413 = vmatpush1.msra.mxu0 0.0
        %414 = vmatprep.subr.mxu0 0.0
        %415 = vmatpush1.msra.mxu0 0.0
        %416 = vmatprep.subr.mxu0 0.0
        %417 = vmatpush1.msra.mxu0 0.0
        %418 = vmatprep.subr.mxu0 0.0
        %419 = vmatpush1.msra.mxu0 0.0
        %420 = vmatprep.subr.mxu0 0.0
        %421 = vmatpush1.msra.mxu0 0.0
        %422 = vmatprep.subr.mxu0 0.0
        %423 = vmatpush1.msra.mxu0 0.0
        %424 = vmatprep.subr.mxu0 0.0
        %425 = vmatpush1.msra.mxu0 0.0
        %426 = vmatprep.subr.mxu0 0.0
        %427 = vmatpush1.msra.mxu0 0.0
        %428 = vmatprep.subr.mxu0 0.0
        %429 = vmatpush1.msra.mxu0 0.0
        %430 = vmatprep.subr.mxu0 0.0
        %431 = vmatpush1.msra.mxu0 0.0
        %432 = vmatprep.subr.mxu0 0.0
        %433 = vmatpush1.msra.mxu0 0.0
        %434 = vmatprep.subr.mxu0 0.0
        %435 = vmatpush1.msra.mxu0 0.0
        %436 = vmatprep.mubr.f32.mxu0 0.0
        %437 = vmatmul.mubr.f32.gmra.mrb[0].mxu0 %v370
        %v438 = vpop.f32.mrb[0].mxu0
        %v439 = vadd.f32 %v366, %v438
        %v440 = vpop.f32.mrb[0].mxu0
        %441 = vdwg.mxu0
        %v442 = vsub.f32 %v439, %v361
        %443 = vxpose.xlu0.b32.start [1/16] %v360, 128
        %444 = vxpose.xlu0.b32.cont [2/16] 0.0, 128
        %445 = vxpose.xlu0.b32.cont [3/16] 0.0, 128
        %446 = vxpose.xlu0.b32.cont [4/16] 0.0, 128
        %447 = vxpose.xlu0.b32.cont [5/16] 0.0, 128
        %448 = vxpose.xlu0.b32.cont [6/16] 0.0, 128
        %449 = vxpose.xlu0.b32.cont [7/16] 0.0, 128
        %450 = vxpose.xlu0.b32.cont [8/16] 0.0, 128
        %451 = vxpose.xlu0.b32.cont [9/16] 0.0, 128
        %452 = vxpose.xlu0.b32.cont [10/16] 0.0, 128
        %453 = vxpose.xlu0.b32.cont [11/16] 0.0, 128
        %454 = vxpose.xlu0.b32.cont [12/16] 0.0, 128
        %455 = vxpose.xlu0.b32.cont [13/16] 0.0, 128
        %456 = vxpose.xlu0.b32.cont [14/16] 0.0, 128
        %457 = vxpose.xlu0.b32.cont [15/16] 0.0, 128
        %458 = vxpose.xlu0.b32.end [16/16] 0.0, 128
        %v459 = vpop.trf.xlu0
        %v460 = vpop.trf.xlu0
        %v461 = vpop.trf.xlu0
        %v462 = vpop.trf.xlu0
        %v463 = vpop.trf.xlu0
        %v464 = vpop.trf.xlu0
        %v465 = vpop.trf.xlu0
        %v466 = vpop.trf.xlu0
        %v467 = vpop.trf.xlu0
        %v468 = vpop.trf.xlu0
        %v469 = vpop.trf.xlu0
        %v470 = vpop.trf.xlu0
        %v471 = vpop.trf.xlu0
        %v472 = vpop.trf.xlu0
        %v473 = vpop.trf.xlu0
        %v474 = vpop.trf.xlu0
        %vm475 = vcmask 31744
        %v477 = vsel %vm475, %v459, 0
        %v480 = vsel %vm475, %v460, 0
        %v483 = vsel %vm475, %v461, 0
        %v486 = vsel %vm475, %v462, 0
        %vm488 = vcmask 1043456
        %v490 = vsel %vm488, %v442, 0
        %492 = vmatprep.subr.mxu0 0.0
        %493 = vmatpush1.msra.mxu0 %v490
        %494 = vmatprep.subr.mxu0 0.0
        %495 = vmatpush1.msra.mxu0 0.0
        %496 = vmatprep.subr.mxu0 0.0
        %497 = vmatpush1.msra.mxu0 0.0
        %498 = vmatprep.subr.mxu0 0.0
        %499 = vmatpush1.msra.mxu0 0.0
        %500 = vmatprep.subr.mxu0 0.0
        %501 = vmatpush1.msra.mxu0 0.0
        %502 = vmatprep.subr.mxu0 0.0
        %503 = vmatpush1.msra.mxu0 0.0
        %504 = vmatprep.subr.mxu0 0.0
        %505 = vmatpush1.msra.mxu0 0.0
        %506 = vmatprep.subr.mxu0 0.0
        %507 = vmatpush1.msra.mxu0 0.0
        %508 = vmatprep.subr.mxu0 0.0
        %509 = vmatpush1.msra.mxu0 0.0
        %510 = vmatprep.subr.mxu0 0.0
        %511 = vmatpush1.msra.mxu0 0.0
        %512 = vmatprep.subr.mxu0 0.0
        %513 = vmatpush1.msra.mxu0 0.0
        %514 = vmatprep.subr.mxu0 0.0
        %515 = vmatpush1.msra.mxu0 0.0
        %516 = vmatprep.subr.mxu0 0.0
        %517 = vmatpush1.msra.mxu0 0.0
        %518 = vmatprep.subr.mxu0 0.0
        %519 = vmatpush1.msra.mxu0 0.0
        %520 = vmatprep.subr.mxu0 0.0
        %521 = vmatpush1.msra.mxu0 0.0
        %522 = vmatprep.subr.mxu0 0.0
        %523 = vmatpush1.msra.mxu0 0.0
        %524 = vmatprep.subr.mxu0 0.0
        %525 = vmatpush1.msra.mxu0 0.0
        %526 = vmatprep.subr.mxu0 0.0
        %527 = vmatpush1.msra.mxu0 0.0
        %528 = vmatprep.subr.mxu0 0.0
        %529 = vmatpush1.msra.mxu0 0.0
        %530 = vmatprep.subr.mxu0 0.0
        %531 = vmatpush1.msra.mxu0 0.0
        %532 = vmatprep.subr.mxu0 0.0
        %533 = vmatpush1.msra.mxu0 0.0
        %534 = vmatprep.subr.mxu0 0.0
        %535 = vmatpush1.msra.mxu0 0.0
        %536 = vmatprep.subr.mxu0 0.0
        %537 = vmatpush1.msra.mxu0 0.0
        %538 = vmatprep.subr.mxu0 0.0
        %539 = vmatpush1.msra.mxu0 0.0
        %540 = vmatprep.subr.mxu0 0.0
        %541 = vmatpush1.msra.mxu0 0.0
        %542 = vmatprep.subr.mxu0 0.0
        %543 = vmatpush1.msra.mxu0 0.0
        %544 = vmatprep.subr.mxu0 0.0
        %545 = vmatpush1.msra.mxu0 0.0
        %546 = vmatprep.subr.mxu0 0.0
        %547 = vmatpush1.msra.mxu0 0.0
        %548 = vmatprep.subr.mxu0 0.0
        %549 = vmatpush1.msra.mxu0 0.0
        %550 = vmatprep.subr.mxu0 0.0
        %551 = vmatpush1.msra.mxu0 0.0
        %552 = vmatprep.subr.mxu0 0.0
        %553 = vmatpush1.msra.mxu0 0.0
        %554 = vmatprep.subr.mxu0 0.0
        %555 = vmatpush1.msra.mxu0 0.0
        %556 = vmatprep.mubr.f32.mxu0 0.0
        %557 = vmatmul.mubr.f32.gmra.mrb[0].mxu0 %v477
        %v558 = vpop.f32.mrb[0].mxu0
        %v559 = vadd.f32 0.0, %v558
        %v560 = vpop.f32.mrb[0].mxu0
        %561 = vmatprep.mubr.f32.mxu0 0.0
        %562 = vmatmul.mubr.f32.gmra.mrb[0].mxu0 %v480
        %v563 = vpop.f32.mrb[0].mxu0
        %v564 = vadd.f32 0.0, %v563
        %v565 = vpop.f32.mrb[0].mxu0
        %566 = vmatprep.mubr.f32.mxu0 0.0
        %567 = vmatmul.mubr.f32.gmra.mrb[0].mxu0 %v483
        %v568 = vpop.f32.mrb[0].mxu0
        %v569 = vadd.f32 0.0, %v568
        %v570 = vpop.f32.mrb[0].mxu0
        %571 = vmatprep.mubr.f32.mxu0 0.0
        %572 = vmatmul.mubr.f32.gmra.mrb[0].mxu0 %v486
        %v573 = vpop.f32.mrb[0].mxu0
        %v574 = vadd.f32 0.0, %v573
        %v575 = vpop.f32.mrb[0].mxu0
        %576 = vdwg.mxu0
        %v577 = vmul.f32 %v559, 0.0625
        %v578 = vmul.f32 %v564, 0.0625
        %v579 = vmul.f32 %v569, 0.0625
        %v580 = vmul.f32 %v574, 0.0625
        %vm581 = vcmask 60416
        %v582 = vsel %vm581, %v442, 0.0
        %v583 = vrot.slane %v582, 4
        %v584 = vadd.f32 %v582, %v583
        %v585 = vrot.slane %v584, 2
        %v586 = vadd.f32 %v584, %v585
        %v587 = vrot.slane %v586, 1
        %v588 = vadd.f32 %v586, %v587
        %v589 = vmul.f32 %v588, 0.0625
        %v590 = vmul.f32 %v577, 0.1
        %v591 = vmul.f32 %v578, 0.1
        %v592 = vmul.f32 %v579, 0.1
        %v593 = vmul.f32 %v580, 0.1
        %v594 = vsub.f32 %v355, %v590
        %v595 = vsub.f32 %v356, %v591
        %v596 = vsub.f32 %v357, %v592
        %v597 = vsub.f32 %v358, %v593
        %v598 = vmul.f32 %v589, 0.1
        %v599 = vsub.f32 %v359, %v598
        %v600 = vld [vmem:[%s346 + $0x4] sm:$0xf]
        %v601 = vld [vmem:[%s350 + $0x4] sm:$0xf]
        %v603 = vlaneseq
        %v604 = vshrl.u32 %v603, 7
        %v605 = vsub.s32 0, %v604
        %v606 = vrot.slane %v599, %v605
        %v609 = vsel %vm368, %v600, 0
        %611 = vmatprep.subr.mxu0 0.0
        %612 = vmatpush1.msra.mxu0 %v594
        %613 = vmatprep.subr.mxu0 0.0
        %614 = vmatpush1.msra.mxu0 %v595
        %615 = vmatprep.subr.mxu0 0.0
        %616 = vmatpush1.msra.mxu0 %v596
        %617 = vmatprep.subr.mxu0 0.0
        %618 = vmatpush1.msra.mxu0 %v597
        %619 = vmatprep.subr.mxu0 0.0
        %620 = vmatpush1.msra.mxu0 0.0
        %621 = vmatprep.subr.mxu0 0.0
        %622 = vmatpush1.msra.mxu0 0.0
        %623 = vmatprep.subr.mxu0 0.0
        %624 = vmatpush1.msra.mxu0 0.0
        %625 = vmatprep.subr.mxu0 0.0
        %626 = vmatpush1.msra.mxu0 0.0
        %627 = vmatprep.subr.mxu0 0.0
        %628 = vmatpush1.msra.mxu0 0.0
        %629 = vmatprep.subr.mxu0 0.0
        %630 = vmatpush1.msra.mxu0 0.0
        %631 = vmatprep.subr.mxu0 0.0
        %632 = vmatpush1.msra.mxu0 0.0
        %633 = vmatprep.subr.mxu0 0.0
        %634 = vmatpush1.msra.mxu0 0.0
        %635 = vmatprep.subr.mxu0 0.0
        %636 = vmatpush1.msra.mxu0 0.0
        %637 = vmatprep.subr.mxu0 0.0
        %638 = vmatpush1.msra.mxu0 0.0
        %639 = vmatprep.subr.mxu0 0.0
        %640 = vmatpush1.msra.mxu0 0.0
        %641 = vmatprep.subr.mxu0 0.0
        %642 = vmatpush1.msra.mxu0 0.0
        %643 = vmatprep.subr.mxu0 0.0
        %644 = vmatpush1.msra.mxu0 0.0
        %645 = vmatprep.subr.mxu0 0.0
        %646 = vmatpush1.msra.mxu0 0.0
        %647 = vmatprep.subr.mxu0 0.0
        %648 = vmatpush1.msra.mxu0 0.0
        %649 = vmatprep.subr.mxu0 0.0
        %650 = vmatpush1.msra.mxu0 0.0
        %651 = vmatprep.subr.mxu0 0.0
        %652 = vmatpush1.msra.mxu0 0.0
        %653 = vmatprep.subr.mxu0 0.0
        %654 = vmatpush1.msra.mxu0 0.0
        %655 = vmatprep.subr.mxu0 0.0
        %656 = vmatpush1.msra.mxu0 0.0
        %657 = vmatprep.subr.mxu0 0.0
        %658 = vmatpush1.msra.mxu0 0.0
        %659 = vmatprep.subr.mxu0 0.0
        %660 = vmatpush1.msra.mxu0 0.0
        %661 = vmatprep.subr.mxu0 0.0
        %662 = vmatpush1.msra.mxu0 0.0
        %663 = vmatprep.subr.mxu0 0.0
        %664 = vmatpush1.msra.mxu0 0.0
        %665 = vmatprep.subr.mxu0 0.0
        %666 = vmatpush1.msra.mxu0 0.0
        %667 = vmatprep.subr.mxu0 0.0
        %668 = vmatpush1.msra.mxu0 0.0
        %669 = vmatprep.subr.mxu0 0.0
        %670 = vmatpush1.msra.mxu0 0.0
        %671 = vmatprep.subr.mxu0 0.0
        %672 = vmatpush1.msra.mxu0 0.0
        %673 = vmatprep.subr.mxu0 0.0
        %674 = vmatpush1.msra.mxu0 0.0
        %675 = vmatprep.mubr.f32.mxu0 0.0
        %676 = vmatmul.mubr.f32.gmra.mrb[0].mxu0 %v609
        %v677 = vpop.f32.mrb[0].mxu0
        %v678 = vadd.f32 %v606, %v677
        %v679 = vpop.f32.mrb[0].mxu0
        %680 = vdwg.mxu0
        %v681 = vsub.f32 %v678, %v601
        %v682 = vmul.f32 %v681, %v681
        %v683 = vsel %vm581, %v682, 0.0
        %684 = vadd.xlane.f32.xlu0 %v683
        %v685 = vpop.xlane.xlu0 %684
        %v686 = vrot.slane %v685, 4
        %v687 = vadd.f32 %v685, %v686
        %v688 = vrot.slane %v687, 2
        %v689 = vadd.f32 %v687, %v688
        %v690 = vrot.slane %v689, 1
        %v691 = vadd.f32 %v689, %v690
        %s692 = vtos %v691
        %v693 = vrcp.pop 32.0
        %s694 = vtos %v693
        %s695 = smul.f32 %s692, %s694
        %696 = vxpose.xlu0.b32.start [1/16] %v600, 128
        %697 = vxpose.xlu0.b32.cont [2/16] 0.0, 128
        %698 = vxpose.xlu0.b32.cont [3/16] 0.0, 128
        %699 = vxpose.xlu0.b32.cont [4/16] 0.0, 128
        %700 = vxpose.xlu0.b32.cont [5/16] 0.0, 128
        %701 = vxpose.xlu0.b32.cont [6/16] 0.0, 128
        %702 = vxpose.xlu0.b32.cont [7/16] 0.0, 128
        %703 = vxpose.xlu0.b32.cont [8/16] 0.0, 128
        %704 = vxpose.xlu0.b32.cont [9/16] 0.0, 128
        %705 = vxpose.xlu0.b32.cont [10/16] 0.0, 128
        %706 = vxpose.xlu0.b32.cont [11/16] 0.0, 128
        %707 = vxpose.xlu0.b32.cont [12/16] 0.0, 128
        %708 = vxpose.xlu0.b32.cont [13/16] 0.0, 128
        %709 = vxpose.xlu0.b32.cont [14/16] 0.0, 128
        %710 = vxpose.xlu0.b32.cont [15/16] 0.0, 128
        %711 = vxpose.xlu0.b32.end [16/16] 0.0, 128
        %v712 = vpop.trf.xlu0
        %v713 = vpop.trf.xlu0
        %v714 = vpop.trf.xlu0
        %v715 = vpop.trf.xlu0
        %v716 = vpop.trf.xlu0
        %v717 = vpop.trf.xlu0
        %v718 = vpop.trf.xlu0
        %v719 = vpop.trf.xlu0
        %v720 = vpop.trf.xlu0
        %v721 = vpop.trf.xlu0
        %v722 = vpop.trf.xlu0
        %v723 = vpop.trf.xlu0
        %v724 = vpop.trf.xlu0
        %v725 = vpop.trf.xlu0
        %v726 = vpop.trf.xlu0
        %v727 = vpop.trf.xlu0
        %v729 = vsel %vm475, %v712, 0
        %v732 = vsel %vm475, %v713, 0
        %v735 = vsel %vm475, %v714, 0
        %v738 = vsel %vm475, %v715, 0
        %v741 = vsel %vm488, %v681, 0
        %743 = vmatprep.subr.mxu0 0.0
        %744 = vmatpush1.msra.mxu0 %v741
        %745 = vmatprep.subr.mxu0 0.0
        %746 = vmatpush1.msra.mxu0 0.0
        %747 = vmatprep.subr.mxu0 0.0
        %748 = vmatpush1.msra.mxu0 0.0
        %749 = vmatprep.subr.mxu0 0.0
        %750 = vmatpush1.msra.mxu0 0.0
        %751 = vmatprep.subr.mxu0 0.0
        %752 = vmatpush1.msra.mxu0 0.0
        %753 = vmatprep.subr.mxu0 0.0
        %754 = vmatpush1.msra.mxu0 0.0
        %755 = vmatprep.subr.mxu0 0.0
        %756 = vmatpush1.msra.mxu0 0.0
        %757 = vmatprep.subr.mxu0 0.0
        %758 = vmatpush1.msra.mxu0 0.0
        %759 = vmatprep.subr.mxu0 0.0
        %760 = vmatpush1.msra.mxu0 0.0
        %761 = vmatprep.subr.mxu0 0.0
        %762 = vmatpush1.msra.mxu0 0.0
        %763 = vmatprep.subr.mxu0 0.0
        %764 = vmatpush1.msra.mxu0 0.0
        %765 = vmatprep.subr.mxu0 0.0
        %766 = vmatpush1.msra.mxu0 0.0
        %767 = vmatprep.subr.mxu0 0.0
        %768 = vmatpush1.msra.mxu0 0.0
        %769 = vmatprep.subr.mxu0 0.0
        %770 = vmatpush1.msra.mxu0 0.0
        %771 = vmatprep.subr.mxu0 0.0
        %772 = vmatpush1.msra.mxu0 0.0
        %773 = vmatprep.subr.mxu0 0.0
        %774 = vmatpush1.msra.mxu0 0.0
        %775 = vmatprep.subr.mxu0 0.0
        %776 = vmatpush1.msra.mxu0 0.0
        %777 = vmatprep.subr.mxu0 0.0
        %778 = vmatpush1.msra.mxu0 0.0
        %779 = vmatprep.subr.mxu0 0.0
        %780 = vmatpush1.msra.mxu0 0.0
        %781 = vmatprep.subr.mxu0 0.0
        %782 = vmatpush1.msra.mxu0 0.0
        %783 = vmatprep.subr.mxu0 0.0
        %784 = vmatpush1.msra.mxu0 0.0
        %785 = vmatprep.subr.mxu0 0.0
        %786 = vmatpush1.msra.mxu0 0.0
        %787 = vmatprep.subr.mxu0 0.0
        %788 = vmatpush1.msra.mxu0 0.0
        %789 = vmatprep.subr.mxu0 0.0
        %790 = vmatpush1.msra.mxu0 0.0
        %791 = vmatprep.subr.mxu0 0.0
        %792 = vmatpush1.msra.mxu0 0.0
        %793 = vmatprep.subr.mxu0 0.0
        %794 = vmatpush1.msra.mxu0 0.0
        %795 = vmatprep.subr.mxu0 0.0
        %796 = vmatpush1.msra.mxu0 0.0
        %797 = vmatprep.subr.mxu0 0.0
        %798 = vmatpush1.msra.mxu0 0.0
        %799 = vmatprep.subr.mxu0 0.0
        %800 = vmatpush1.msra.mxu0 0.0
        %801 = vmatprep.subr.mxu0 0.0
        %802 = vmatpush1.msra.mxu0 0.0
        %803 = vmatprep.subr.mxu0 0.0
        %804 = vmatpush1.msra.mxu0 0.0
        %805 = vmatprep.subr.mxu0 0.0
        %806 = vmatpush1.msra.mxu0 0.0
        %807 = vmatprep.mubr.f32.mxu0 0.0
        %808 = vmatmul.mubr.f32.gmra.mrb[0].mxu0 %v729
        %v809 = vpop.f32.mrb[0].mxu0
        %v810 = vadd.f32 0.0, %v809
        %v811 = vpop.f32.mrb[0].mxu0
        %812 = vmatprep.mubr.f32.mxu0 0.0
        %813 = vmatmul.mubr.f32.gmra.mrb[0].mxu0 %v732
        %v814 = vpop.f32.mrb[0].mxu0
        %v815 = vadd.f32 0.0, %v814
        %v816 = vpop.f32.mrb[0].mxu0
        %817 = vmatprep.mubr.f32.mxu0 0.0
        %818 = vmatmul.mubr.f32.gmra.mrb[0].mxu0 %v735
        %v819 = vpop.f32.mrb[0].mxu0
        %v820 = vadd.f32 0.0, %v819
        %v821 = vpop.f32.mrb[0].mxu0
        %822 = vmatprep.mubr.f32.mxu0 0.0
        %823 = vmatmul.mubr.f32.gmra.mrb[0].mxu0 %v738
        %v824 = vpop.f32.mrb[0].mxu0
        %v825 = vadd.f32 0.0, %v824
        %v826 = vpop.f32.mrb[0].mxu0
        %827 = vdwg.mxu0
        %v828 = vmul.f32 %v810, 0.0625
        %v829 = vmul.f32 %v815, 0.0625
        %v830 = vmul.f32 %v820, 0.0625
        %v831 = vmul.f32 %v825, 0.0625
        %v832 = vsel %vm581, %v681, 0.0
        %v833 = vrot.slane %v832, 4
        %v834 = vadd.f32 %v832, %v833
        %v835 = vrot.slane %v834, 2
        %v836 = vadd.f32 %v834, %v835
        %v837 = vrot.slane %v836, 1
        %v838 = vadd.f32 %v836, %v837
        %v839 = vmul.f32 %v838, 0.0625
        %v840 = vmul.f32 %v828, 0.1
        %v841 = vmul.f32 %v829, 0.1
        %v842 = vmul.f32 %v830, 0.1
        %v843 = vmul.f32 %v831, 0.1
        %v844 = vsub.f32 %v594, %v840
        %v845 = vsub.f32 %v595, %v841
        %v846 = vsub.f32 %v596, %v842
        %v847 = vsub.f32 %v597, %v843
        %v848 = vmul.f32 %v839, 0.1
        %v849 = vsub.f32 %v599, %v848
        %v850 = vld [vmem:[%s296] sm:$0xf]
        %v851 = vld [vmem:[%s354] sm:$0xf]
        %v853 = vlaneseq
        %v854 = vshrl.u32 %v853, 7
        %v855 = vsub.s32 0, %v854
        %v856 = vrot.slane %v849, %v855
        %v859 = vsel %vm368, %v850, 0
        %861 = vmatprep.subr.mxu0 0.0
        %862 = vmatpush1.msra.mxu0 %v844
        %863 = vmatprep.subr.mxu0 0.0
        %864 = vmatpush1.msra.mxu0 %v845
        %865 = vmatprep.subr.mxu0 0.0
        %866 = vmatpush1.msra.mxu0 %v846
        %867 = vmatprep.subr.mxu0 0.0
        %868 = vmatpush1.msra.mxu0 %v847
        %869 = vmatprep.subr.mxu0 0.0
        %870 = vmatpush1.msra.mxu0 0.0
        %871 = vmatprep.subr.mxu0 0.0
        %872 = vmatpush1.msra.mxu0 0.0
        %873 = vmatprep.subr.mxu0 0.0
        %874 = vmatpush1.msra.mxu0 0.0
        %875 = vmatprep.subr.mxu0 0.0
        %876 = vmatpush1.msra.mxu0 0.0
        %877 = vmatprep.subr.mxu0 0.0
        %878 = vmatpush1.msra.mxu0 0.0
        %879 = vmatprep.subr.mxu0 0.0
        %880 = vmatpush1.msra.mxu0 0.0
        %881 = vmatprep.subr.mxu0 0.0
        %882 = vmatpush1.msra.mxu0 0.0
        %883 = vmatprep.subr.mxu0 0.0
        %884 = vmatpush1.msra.mxu0 0.0
        %885 = vmatprep.subr.mxu0 0.0
        %886 = vmatpush1.msra.mxu0 0.0
        %887 = vmatprep.subr.mxu0 0.0
        %888 = vmatpush1.msra.mxu0 0.0
        %889 = vmatprep.subr.mxu0 0.0
        %890 = vmatpush1.msra.mxu0 0.0
        %891 = vmatprep.subr.mxu0 0.0
        %892 = vmatpush1.msra.mxu0 0.0
        %893 = vmatprep.subr.mxu0 0.0
        %894 = vmatpush1.msra.mxu0 0.0
        %895 = vmatprep.subr.mxu0 0.0
        %896 = vmatpush1.msra.mxu0 0.0
        %897 = vmatprep.subr.mxu0 0.0
        %898 = vmatpush1.msra.mxu0 0.0
        %899 = vmatprep.subr.mxu0 0.0
        %900 = vmatpush1.msra.mxu0 0.0
        %901 = vmatprep.subr.mxu0 0.0
        %902 = vmatpush1.msra.mxu0 0.0
        %903 = vmatprep.subr.mxu0 0.0
        %904 = vmatpush1.msra.mxu0 0.0
        %905 = vmatprep.subr.mxu0 0.0
        %906 = vmatpush1.msra.mxu0 0.0
        %907 = vmatprep.subr.mxu0 0.0
        %908 = vmatpush1.msra.mxu0 0.0
        %909 = vmatprep.subr.mxu0 0.0
        %910 = vmatpush1.msra.mxu0 0.0
        %911 = vmatprep.subr.mxu0 0.0
        %912 = vmatpush1.msra.mxu0 0.0
        %913 = vmatprep.subr.mxu0 0.0
        %914 = vmatpush1.msra.mxu0 0.0
        %915 = vmatprep.subr.mxu0 0.0
        %916 = vmatpush1.msra.mxu0 0.0
        %917 = vmatprep.subr.mxu0 0.0
        %918 = vmatpush1.msra.mxu0 0.0
        %919 = vmatprep.subr.mxu0 0.0
        %920 = vmatpush1.msra.mxu0 0.0
        %921 = vmatprep.subr.mxu0 0.0
        %922 = vmatpush1.msra.mxu0 0.0
        %923 = vmatprep.subr.mxu0 0.0
        %924 = vmatpush1.msra.mxu0 0.0
        %925 = vmatprep.mubr.f32.mxu0 0.0
        %926 = vmatmul.mubr.f32.gmra.mrb[0].mxu0 %v859
        %v927 = vpop.f32.mrb[0].mxu0
        %v928 = vadd.f32 %v856, %v927
        %v929 = vpop.f32.mrb[0].mxu0
        %930 = vdwg.mxu0
        %931 = vst.msk [vmem:[%s342] sm:$0xf] %vm581, %v928
        %v932 = vsub.f32 %v928, %v851
        %v933 = vmul.f32 %v932, %v932
        %v934 = vsel %vm581, %v933, 0.0
        %935 = vadd.xlane.f32.xlu0 %v934
        %v936 = vpop.xlane.xlu0 %935
        %v937 = vrot.slane %v936, 4
        %v938 = vadd.f32 %v936, %v937
        %v939 = vrot.slane %v938, 2
        %v940 = vadd.f32 %v938, %v939
        %v941 = vrot.slane %v940, 1
        %v942 = vadd.f32 %v940, %v941
        %s943 = vtos %v942
        %v944 = vrcp.pop 32.0
        %s945 = vtos %v944
        %s946 = smul.f32 %s943, %s945
        %s947 = sadd.f32 %s695, %s946
        %v948 = vld [vmem:[%s296 + $0x4] sm:$0xf]
        %v949 = vld [vmem:[%s354 + $0x4] sm:$0xf]
        %v951 = vsel %vm368, %v948, 0
        %953 = vmatprep.subr.mxu0 0.0
        %954 = vmatpush1.msra.mxu0 %v844
        %955 = vmatprep.subr.mxu0 0.0
        %956 = vmatpush1.msra.mxu0 %v845
        %957 = vmatprep.subr.mxu0 0.0
        %958 = vmatpush1.msra.mxu0 %v846
        %959 = vmatprep.subr.mxu0 0.0
        %960 = vmatpush1.msra.mxu0 %v847
        %961 = vmatprep.subr.mxu0 0.0
        %962 = vmatpush1.msra.mxu0 0.0
        %963 = vmatprep.subr.mxu0 0.0
        %964 = vmatpush1.msra.mxu0 0.0
        %965 = vmatprep.subr.mxu0 0.0
        %966 = vmatpush1.msra.mxu0 0.0
        %967 = vmatprep.subr.mxu0 0.0
        %968 = vmatpush1.msra.mxu0 0.0
        %969 = vmatprep.subr.mxu0 0.0
        %970 = vmatpush1.msra.mxu0 0.0
        %971 = vmatprep.subr.mxu0 0.0
        %972 = vmatpush1.msra.mxu0 0.0
        %973 = vmatprep.subr.mxu0 0.0
        %974 = vmatpush1.msra.mxu0 0.0
        %975 = vmatprep.subr.mxu0 0.0
        %976 = vmatpush1.msra.mxu0 0.0
        %977 = vmatprep.subr.mxu0 0.0
        %978 = vmatpush1.msra.mxu0 0.0
        %979 = vmatprep.subr.mxu0 0.0
        %980 = vmatpush1.msra.mxu0 0.0
        %981 = vmatprep.subr.mxu0 0.0
        %982 = vmatpush1.msra.mxu0 0.0
        %983 = vmatprep.subr.mxu0 0.0
        %984 = vmatpush1.msra.mxu0 0.0
        %985 = vmatprep.subr.mxu0 0.0
        %986 = vmatpush1.msra.mxu0 0.0
        %987 = vmatprep.subr.mxu0 0.0
        %988 = vmatpush1.msra.mxu0 0.0
        %989 = vmatprep.subr.mxu0 0.0
        %990 = vmatpush1.msra.mxu0 0.0
        %991 = vmatprep.subr.mxu0 0.0
        %992 = vmatpush1.msra.mxu0 0.0
        %993 = vmatprep.subr.mxu0 0.0
        %994 = vmatpush1.msra.mxu0 0.0
        %995 = vmatprep.subr.mxu0 0.0
        %996 = vmatpush1.msra.mxu0 0.0
        %997 = vmatprep.subr.mxu0 0.0
        %998 = vmatpush1.msra.mxu0 0.0
        %999 = vmatprep.subr.mxu0 0.0
        %1000 = vmatpush1.msra.mxu0 0.0
        %1001 = vmatprep.subr.mxu0 0.0
        %1002 = vmatpush1.msra.mxu0 0.0
        %1003 = vmatprep.subr.mxu0 0.0
        %1004 = vmatpush1.msra.mxu0 0.0
        %1005 = vmatprep.subr.mxu0 0.0
        %1006 = vmatpush1.msra.mxu0 0.0
        %1007 = vmatprep.subr.mxu0 0.0
        %1008 = vmatpush1.msra.mxu0 0.0
        %1009 = vmatprep.subr.mxu0 0.0
        %1010 = vmatpush1.msra.mxu0 0.0
        %1011 = vmatprep.subr.mxu0 0.0
        %1012 = vmatpush1.msra.mxu0 0.0
        %1013 = vmatprep.subr.mxu0 0.0
        %1014 = vmatpush1.msra.mxu0 0.0
        %1015 = vmatprep.subr.mxu0 0.0
        %1016 = vmatpush1.msra.mxu0 0.0
        %1017 = vmatprep.mubr.f32.mxu0 0.0
        %1018 = vmatmul.mubr.f32.gmra.mrb[0].mxu0 %v951
        %v1019 = vpop.f32.mrb[0].mxu0
        %v1020 = vadd.f32 %v856, %v1019
        %v1021 = vpop.f32.mrb[0].mxu0
        %1022 = vdwg.mxu0
        %1023 = vst.msk [vmem:[%s342 + $0x4] sm:$0xf] %vm581, %v1020
        %v1024 = vsub.f32 %v1020, %v949
        %v1025 = vmul.f32 %v1024, %v1024
        %v1026 = vsel %vm581, %v1025, 0.0
        %1027 = vadd.xlane.f32.xlu0 %v1026
        %v1028 = vpop.xlane.xlu0 %1027
        %v1029 = vrot.slane %v1028, 4
        %v1030 = vadd.f32 %v1028, %v1029
        %v1031 = vrot.slane %v1030, 2
        %v1032 = vadd.f32 %v1030, %v1031
        %v1033 = vrot.slane %v1032, 1
        %v1034 = vadd.f32 %v1032, %v1033
        %s1035 = vtos %v1034
        %v1036 = vrcp.pop 32.0
        %s1037 = vtos %v1036
        %s1038 = smul.f32 %s1035, %s1037
        %s1039 = sadd.f32 %s947, %s1038
        %v1040 = vrcp.pop 2.0
        %s1041 = vtos %v1040
        %s1042 = smul.f32 %s1039, %s1041
        %v1043 = vstv %s1042
        %1044 = vst [vmem:[%s335] sm:$0x1] %v1043
        %s1045 = sand.u32 %s182, 1
        %s1046 = scalar_lea.sflag [#allocation4], %s1045
        %s1047 = sand.u32 %s182, 1
        %s1048 = scalar_lea.vmem [#allocation5], %s1047
        %s1049 = sand.u32 %s208, 1
        %s1050 = scalar_lea.sflag [#allocation7], %s1049
        %s1051 = sand.u32 %s208, 1
        %s1052 = smul.addr %s1051, 8
        %s1053 = scalar_lea.vmem [#allocation6], %s1052
        // Predicated region
        $region49: #{tpu_custom_call.1} parent=43 // pred_check
          %p1054 = pneg %p192
        $region50: #{tpu_custom_call.1} parent=43 // pred_check_branch
          %1056 = sbr.rel (%p1054) target = $region52
        $region51: #{tpu_custom_call.1} parent=43 // pred_region
          %s1058 = ssub.s32 16, 16
          %1059 = vsyncadd %s1046, %s1058
          %s1060 = smul.addr %s28, 16
          %s1061 = scalar_lea.hbm %s6, %s1060
          %s1063 = sshll.u32 %s1048, 4
          %s1064 = int_to_ptr.vmem [resolvable:$true] %s1063
          %1066 = dma.vmem_to_hbm [thread:$0]  %s1064, 16, %s1061, %s1046
        $region52: #{tpu_custom_call.1} parent=43 // pred_fallthru
          _
        // Predicated region
        $region53: #{tpu_custom_call.1} parent=43 // pred_check
          %p1067 = pneg %p218
        $region54: #{tpu_custom_call.1} parent=43 // pred_check_branch
          %1069 = sbr.rel (%p1067) target = $region56
        $region55: #{tpu_custom_call.1} parent=43 // pred_region
          %s1071 = ssub.s32 128, 128
          %1072 = vsyncadd %s1050, %s1071
          %s1073 = smul.addr %s28, 128
          %s1074 = scalar_lea.hbm %s7, %s1073
          %s1076 = sshll.u32 %s1053, 4
          %s1077 = int_to_ptr.vmem [resolvable:$true] %s1076
          %1079 = dma.vmem_to_hbm [thread:$0]  %s1077, 128, %s1074, %s1050
        $region56: #{tpu_custom_call.1} parent=43 // pred_fallthru
          _
      $region44: #{tpu_custom_call.1} parent=5 // pred_fallthru
        _
      %p1080 = scmp.le.s32.totalorder 2, %s23
      // Predicated region
      $region57: #{tpu_custom_call.1} parent=5 // pred_check
        %p1081 = pneg %p1080
      $region58: #{tpu_custom_call.1} parent=5 // pred_check_branch
        %1083 = sbr.rel (%p1081) target = $region60
      $region59: #{tpu_custom_call.1} parent=5 // pred_region
        %s1084 = ssub.s32 %s23, 2
        // Predicated region
        $region61: #{tpu_custom_call.1} parent=59 // pred_check
          %p1085 = pneg %p198
        $region62: #{tpu_custom_call.1} parent=59 // pred_check_branch
          %1087 = sbr.rel (%p1085) target = $region64
        $region63: #{tpu_custom_call.1} parent=59 // pred_region
          %s1088 = sand.u32 %s183, 1
          %s1089 = scalar_lea.sflag [#allocation4], %s1088
          %s1090 = sand.u32 %s183, 1
          %s1091 = scalar_lea.vmem [#allocation5], %s1090
          %1092 = dma.done %s1089, 16
        $region64: #{tpu_custom_call.1} parent=59 // pred_fallthru
          _
        // Predicated region
        $region65: #{tpu_custom_call.1} parent=59 // pred_check
          %p1093 = pneg %p224
        $region66: #{tpu_custom_call.1} parent=59 // pred_check_branch
          %1095 = sbr.rel (%p1093) target = $region68
        $region67: #{tpu_custom_call.1} parent=59 // pred_region
          %s1096 = sand.u32 %s209, 1
          %s1097 = scalar_lea.sflag [#allocation7], %s1096
          %s1098 = sand.u32 %s209, 1
          %s1099 = smul.addr %s1098, 8
          %s1100 = scalar_lea.vmem [#allocation6], %s1099
          %1101 = dma.done %s1097, 128
        $region68: #{tpu_custom_call.1} parent=59 // pred_fallthru
          _
      $region60: #{tpu_custom_call.1} parent=5 // pred_fallthru
        _
    $region6: #{tpu_custom_call.1} parent=1 // loop_footer
      %s27 = sadd.s32 1, %s23
    $region7: #{tpu_custom_call.1} parent=1 // loop_footer_branch
      %22 = sbr.rel target = $region3
    $region8: #{tpu_custom_call.1} parent=1 // loop_exit
      _
    %1102 = vsyncpa [#allocation3], 1
    %s1103 = scalar_lea.sflag [#allocation3], 1
    %1104 = vsyncpa %s1103, 1
    %1105 = vsyncpa [#allocation4], 1
    %s1106 = scalar_lea.sflag [#allocation4], 1
    %1107 = vsyncpa %s1106, 1
    %1108 = vsyncpa [#allocation7], 1
    %s1109 = scalar_lea.sflag [#allocation7], 1
    %1110 = vsyncpa %s1109, 1

</llo_original>
